<compile_context>
chip_gen: v5e
topology: v5e:2x2
jax: 0.10.0
libtpu: 0.0.40
codegen_flags: <defaults>
</compile_context>

<pallas_src>
import jax
import jax.numpy as jnp
from jax.experimental import pallas as pl
from jax.experimental.pallas import tpu as pltpu

_LANE = 128
_PALLAS_MIN_BYTES = 256 * 1024  # below this, pure JAX (XLA fusion) wins


def _row_major_kernel(x_ref, w_ref, b_ref, o_ref):
    # x_ref: (TILE_B, F) f32 VMEM   w_ref: (1, F) f32 VMEM
    # b_ref: (1, 1)      f32 SMEM   o_ref: (1, TILE_B) f32 VMEM (lane-dense)
    prod = x_ref[...] * w_ref[...]            # VPU: weight row broadcast over batch rows
    z = jnp.sum(prod, axis=1) + b_ref[0, 0]   # XLU lane reduce -> (TILE_B,), scalar bias
    o_ref[...] = jax.nn.sigmoid(z)[None, :]   # exp on EUP; full-lane stores


def _feature_major_kernel(xt_ref, w_ref, b_ref, o_ref):
    # xt_ref: (F, TILE_B) f32 VMEM (dense: F=32 is a multiple of 8 sublanes)
    # w_ref:  (F, 1)      f32 VMEM  b_ref: (1,1) SMEM  o_ref: (1, TILE_B)
    prod = xt_ref[...] * w_ref[...]                      # VPU, weight broadcast over lanes
    z = jnp.sum(prod, axis=0, keepdims=True) + b_ref[0, 0]  # cheap sublane reduce, lane-major
    o_ref[...] = jax.nn.sigmoid(z)                       # no relayout before the store


def _choose_tile(batch, tile_b):
    """Pick a batch tile: big enough to amortize the ~0.35us/step overhead,
    but with >= 4 grid steps (2 per TensorCore on v7x) when there is work."""
    if batch <= 4 * _LANE:
        return batch                        # single block; exact shape, no padding games
    tile = min(tile_b, batch)
    tile = min(tile, -(-batch // 4))        # keep the grid >= 4 steps
    return max(_LANE, (tile // _LANE) * _LANE)


def linear_sigmoid(x, w, b, *, tile_b=8192, x_layout="bf",
                   lane_major_output=False, force_pallas=False):
    """sigmoid(x @ w.T + b) for torch.nn.Linear(F, 1) parameters.

    x_layout="bf": x is (B, F)  (PyTorch layout; HBM reads are lane-padded).
    x_layout="fb": x is (F, B)  (producer-emitted feature-major layout; dense
                   HBM reads -> use when the producer can supply it).
    w: (1, F) torch Linear weight, b: (1,) bias.
    Returns (B, 1) by default (torch semantics); (1, B) if lane_major_output.
    """
    w_row = jnp.asarray(w, jnp.float32).reshape(1, -1)
    n_feat = w_row.shape[1]
    b_s = jnp.asarray(b, jnp.float32).reshape(1, 1)
    x = jnp.asarray(x, jnp.float32)

    if x_layout == "bf":
        batch = x.shape[0]
        assert x.shape[1] == n_feat
    elif x_layout == "fb":
        batch = x.shape[1]
        assert x.shape[0] == n_feat
    else:
        raise ValueError("x_layout must be 'bf' or 'fb'")

    # Tiny problems: skip the pallas_call entirely.
    if not force_pallas and batch * n_feat * 4 < _PALLAS_MIN_BYTES:
        xv = x if x_layout == "bf" else x.T
        y = jax.nn.sigmoid(xv @ w_row.T + b_s)           # (B, 1)
        return y.T if lane_major_output else y

    tile = _choose_tile(batch, tile_b)
    grid = (pl.cdiv(batch, tile),)
    # Note: when batch % tile != 0 the padded rows of the last block flow
    # through the math but the output writeback is masked, so results are exact.

    if x_layout == "bf":
        kernel = _row_major_kernel
        x_spec = pl.BlockSpec((tile, n_feat), lambda i: (i, 0))
        w_arg = w_row
        w_spec = pl.BlockSpec((1, n_feat), lambda i: (0, 0))
        in_block_bytes = tile * _LANE * 4                # feature dim lane-padded to 128
    else:
        kernel = _feature_major_kernel
        x_spec = pl.BlockSpec((n_feat, tile), lambda i: (0, i))
        w_arg = w_row.reshape(n_feat, 1)
        w_spec = pl.BlockSpec((n_feat, 1), lambda i: (0, 0))
        in_block_bytes = max(n_feat, 8) * tile * 4       # dense read

    out_block_bytes = 8 * tile * 4                       # (1, tile) sublane-padded
    vmem_limit = max(2 * (in_block_bytes + out_block_bytes) + (2 << 20), 8 << 20)

    out = pl.pallas_call(
        kernel,
        out_shape=jax.ShapeDtypeStruct((1, batch), jnp.float32),
        grid=grid,
        in_specs=[
            x_spec,                                            # batch tile of x
            w_spec,                                            # resident weight
            pl.BlockSpec(memory_space=pltpu.MemorySpace.SMEM),  # scalar bias
        ],
        out_specs=pl.BlockSpec((1, tile), lambda i: (0, i)),   # lane-dense output slab
        compiler_params=pltpu.CompilerParams(
            dimension_semantics=("parallel",),                 # megacore / v7x 2-TC split
            vmem_limit_bytes=int(vmem_limit)),
    )(x, w_arg, b_s)

    if lane_major_output:
        return out
    # NOTE: under TPU tiled layouts this reshape may materialize a lane-padded
    # copy; kept only to honour torch's (B, 1) output contract.  Prefer
    # lane_major_output=True or fusing the reshape into the consumer.
    return out.reshape(batch, 1)


def reference(x, w, b):
    return jax.nn.sigmoid(x @ jnp.asarray(w, jnp.float32).T
                          + jnp.asarray(b, jnp.float32).reshape(1, -1))


if __name__ == "__main__":
    key = jax.random.PRNGKey(0)
    kx, kw, kb, kx2 = jax.random.split(key, 4)

    batch, n_input_features = 8, 32
    x = jax.random.normal(kx, (batch, n_input_features), dtype=jnp.float32)
    bound = 1.0 / (n_input_features ** 0.5)
    w = jax.random.uniform(kw, (1, n_input_features), jnp.float32, -bound, bound)
    b = jax.random.uniform(kb, (1,), jnp.float32, -bound, bound)

    y_ref = reference(x, w, b)

    # 1) Small batch forced through the Pallas kernel (normally bypassed).
    y = linear_sigmoid(x, w, b, force_pallas=True)
    jax.block_until_ready(y)
    assert y.shape == (batch, 1)
    assert jnp.allclose(y, y_ref, atol=1e-5, rtol=1e-5)

    # 2) Tiny-batch pure-JAX bypass path.
    y_bypass = linear_sigmoid(x, w, b)
    assert jnp.allclose(y_bypass, y_ref, atol=1e-5, rtol=1e-5)

    # 3) Multi-block "parallel" grid on the torch (B, F) layout.
    big = 4096
    x_big = jax.random.normal(kx2, (big, n_input_features), dtype=jnp.float32)
    y_big_ref = reference(x_big, w, b)
    y_big = linear_sigmoid(x_big, w, b)
    jax.block_until_ready(y_big)
    assert y_big.shape == (big, 1)
    assert jnp.allclose(y_big, y_big_ref, atol=1e-5, rtol=1e-5)

    # 4) Dense-read feature-major fast path with lane-major output.
    #    (x_big.T here stands in for a producer that emits the (F, B) layout.)
    y_fm = linear_sigmoid(x_big.T, w, b, x_layout="fb", lane_major_output=True)
    jax.block_until_ready(y_fm)
    assert y_fm.shape == (1, big)
    assert jnp.allclose(y_fm.reshape(big, 1), y_big_ref, atol=1e-5, rtol=1e-5)

    print("KERNEL_OK")
</pallas_src>

<mosaic_0001>
module attributes {stable_mosaic.version = 11 : i64} {
  func.func @_row_major_kernel(%arg0: i32, %arg1: memref<8x32xf32, #tpu.memory_space<vmem>>, %arg2: memref<1x32xf32, #tpu.memory_space<vmem>>, %arg3: memref<1x1xf32, #tpu.memory_space<smem>>, %arg4: memref<1x8xf32, #tpu.memory_space<vmem>>) attributes {dimension_semantics = [#tpu.dimension_semantics<parallel>], iteration_bounds = array<i64: 1>, scalar_prefetch = 0 : i64, scratch_operands = 0 : i64, tpu.core_type = #tpu.core_type<tc>, window_params = [{transform_indices = @transform_0, window_bounds = array<i64: 8, 32>}, {pipeline_mode = #tpu.pipeline_mode<synchronous>, transform_indices = @transform_1, window_bounds = array<i64: 1, 32>}, {transform_indices = @transform_2, window_bounds = array<i64: 1, 1>}, {transform_indices = @transform_3, window_bounds = array<i64: 1, 8>}]} {
    %c0 = arith.constant 0 : index
    %c0_0 = arith.constant 0 : index
    %0 = vector.load %arg1[%c0, %c0_0] : memref<8x32xf32, #tpu.memory_space<vmem>>, vector<8x32xf32>
    %c0_1 = arith.constant 0 : index
    %c0_2 = arith.constant 0 : index
    %1 = vector.load %arg2[%c0_1, %c0_2] : memref<1x32xf32, #tpu.memory_space<vmem>>, vector<1x32xf32>
    %2 = vector.broadcast %1 : vector<1x32xf32> to vector<8x32xf32>
    %3 = arith.mulf %0, %2 : vector<8x32xf32>
    %cst = arith.constant dense<0.000000e+00> : vector<8xf32>
    %4 = vector.multi_reduction <add>, %3, %cst [1] : vector<8x32xf32> to vector<8xf32>
    %c0_3 = arith.constant 0 : index
    %c0_4 = arith.constant 0 : index
    %5 = memref.load %arg3[%c0_3, %c0_4] : memref<1x1xf32, #tpu.memory_space<smem>>
    %6 = vector.broadcast %5 : f32 to vector<8xf32>
    %7 = arith.addf %4, %6 : vector<8xf32>
    %8 = arith.negf %7 : vector<8xf32>
    %9 = math.exp %8 : vector<8xf32>
    %cst_5 = arith.constant 1.000000e+00 : f32
    %10 = vector.broadcast %cst_5 : f32 to vector<8xf32>
    %11 = arith.addf %10, %9 : vector<8xf32>
    %12 = arith.divf %10, %11 : vector<8xf32>
    %13 = vector.shape_cast %12 : vector<8xf32> to vector<1x8xf32>
    %c0_6 = arith.constant 0 : index
    %c0_7 = arith.constant 0 : index
    %14 = vector.load %arg4[%c0_6, %c0_7] : memref<1x8xf32, #tpu.memory_space<vmem>>, vector<1x8xf32>
    tpu.vector_store %arg4[%c0_6, %c0_7], %13 {strides = array<i32>} : memref<1x8xf32, #tpu.memory_space<vmem>>, vector<1x8xf32>,
    return
  }
  func.func @transform_0(%arg0: i32) -> (i32, i32) {
    %c0_i32 = arith.constant 0 : i32
    %c0_i32_0 = arith.constant 0 : i32
    return %arg0, %c0_i32 : i32, i32
  }
  func.func @transform_1(%arg0: i32) -> (i32, i32) {
    %c0_i32 = arith.constant 0 : i32
    %c0_i32_0 = arith.constant 0 : i32
    %c0_i32_1 = arith.constant 0 : i32
    return %c0_i32, %c0_i32_0 : i32, i32
  }
  func.func @transform_2(%arg0: i32) -> (i32, i32) {
    %c0_i32 = arith.constant 0 : i32
    %c0_i32_0 = arith.constant 0 : i32
    %c0_i32_1 = arith.constant 0 : i32
    return %c0_i32, %c0_i32_0 : i32, i32
  }
  func.func @transform_3(%arg0: i32) -> (i32, i32) {
    %c0_i32 = arith.constant 0 : i32
    %c0_i32_0 = arith.constant 0 : i32
    return %c0_i32, %arg0 : i32, i32
  }
}

</mosaic_0001>

<llo_original>
// kernel: tpu_custom_call.1
$region0: #{tpu_custom_call.1}
  #allocation0 [shape = 'u32[]', space=smem, size = 0x4, offset = 0x4, fixed_abs, tag = 'smem constant byte address 0x4 - core index']
  #allocation1 [shape = 'u32[72,128]{1,0:T(1,128)}', space=vmem, size = 0x9000, scoped, tag = 'internal scratch']
  #allocation2 [shape = 'f32[1,1]{1,0:T(1,128)S(6)}', space=smem, size = 0x200, scoped, tag = 'scoped memory for tpu_custom_call.1']
  %s0 = inlined_call_operand.hbm [shape: f32[8,32], index: 0, kind: input, shape index: {}]
  %s1 = inlined_call_operand.vmem [shape: f32[1,32], index: 1, kind: input, shape index: {}]
  %s2 = inlined_call_operand.<no memory space> [shape: f32[1,1], index: 2, kind: input, shape index: {}]
  %s3 = inlined_call_operand.hbm [shape: f32[1,8], index: 3, kind: output, shape index: {}]
  %s4 = sld [smem:[#allocation0]]
  $region26: #{tpu_custom_call.1} parent=0
    _
  %s6 = ssub.s32 1, %s4
  %s7 = scalar_select 0, %s6, %s4
  %8 = sst [smem:[#allocation2]] %s2
  $region1: #{tpu_custom_call.1} parent=0
    #allocation3 [shape = 'u8[4096]{0}', space=vmem, size = 0x1000, scoped, tag = 'input window, operand 0, single buffered']
    #allocation4 [shape = 's32[1]{0}', space=sflag, size = 0x4, scoped, tag = 'scoped memory for tpu_custom_call.1']
    #allocation5 [shape = 's32[1]{0}', space=sflag, size = 0x4, scoped, tag = 'scoped memory for tpu_custom_call.1']
    #allocation6 [shape = 'u8[512]{0}', space=vmem, size = 0x400, scoped, tag = 'output window, operand 0, single buffered']
    %9 = vsyncpa [#allocation4], 0
    %10 = vsyncpa [#allocation5], 0
    // Predicated region
    $region2: #{tpu_custom_call.1} parent=1 // pred_check
      _
    $region3: #{tpu_custom_call.1} parent=1 // pred_check_branch
      %12 = sbr.rel (0) target = $region5
    $region4: #{tpu_custom_call.1} parent=1 // pred_region
      %14 = vsyncadd [#allocation4], 0
      %s16 = sshll.u32 %s0, 4
      %s17 = int_to_ptr.hbm [resolvable:$true] %s16
      %s18 = sshll.u32 [#allocation3], 4
      %s19 = int_to_ptr.vmem [resolvable:$true] %s18
      %21 = dma.hbm_to_vmem [thread:$0]  %s17, 128, %s19, [#allocation4]
    $region5: #{tpu_custom_call.1} parent=1 // pred_fallthru
      _
    // Predicated region
    $region6: #{tpu_custom_call.1} parent=1 // pred_check
      _
    $region7: #{tpu_custom_call.1} parent=1 // pred_check_branch
      %23 = sbr.rel (0) target = $region9
    $region8: #{tpu_custom_call.1} parent=1 // pred_region
      _
    $region9: #{tpu_custom_call.1} parent=1 // pred_fallthru
      _
    // Predicated region
    $region10: #{tpu_custom_call.1} parent=1 // pred_check
      _
    $region11: #{tpu_custom_call.1} parent=1 // pred_check_branch
      %25 = sbr.rel (0) target = $region13
    $region12: #{tpu_custom_call.1} parent=1 // pred_region
      _
    $region13: #{tpu_custom_call.1} parent=1 // pred_fallthru
      _
    // Predicated region
    $region14: #{tpu_custom_call.1} parent=1 // pred_check
      _
    $region15: #{tpu_custom_call.1} parent=1 // pred_check_branch
      %27 = sbr.rel (0) target = $region17
    $region16: #{tpu_custom_call.1} parent=1 // pred_region
      %29 = dma.done [#allocation4], 128
    $region17: #{tpu_custom_call.1} parent=1 // pred_fallthru
      _
    %v30 = vld [vmem:[#allocation3] sm:$0xff]
    %v31 = vld [vmem:[%s1] sm:$0x1]
    %v33 = vperm.slane %v31, 0
    %v35 = vmul.f32 %v30, %v33
    %vm36 = vcmask 261120
    %v37 = vsel %vm36, %v35, 0.0
    %38 = vadd.xlane.f32.xlu0 %v37
    %v39 = vpop.xlane.xlu0 %38
    %s40 = sld [smem:[#allocation2]]
    %v41 = vstv %s40
    %v42 = vadd.f32 %v39, %v41
    %v43 = vxor.u32 %v42, 2147483648
    %v44 = vmul.f32 %v43, 1.442695
    %v45 = vpow.pop %v44
    %v46 = vadd.f32 %v45, 1.0
    %v47 = vrcp.pop %v46
    %v48 = vmul.f32 %v46, %v47
    %v49 = vsub.f32 1.0, %v48
    %v50 = vmul.f32 %v47, %v49
    %v51 = vadd.f32 %v47, %v50
    %vm52 = vweird.f32 %v46
    %vm53 = vweird.f32 %v47
    %vm54 = vmor %vm52, %vm53
    %v55 = vsel %vm54, %v47, %v51
    %v56 = vand.u32 2147483647, %v46
    %vm57 = vcmp.eq.f32.partialorder %v56, 8.507059e+37
    %v58 = vand.u32 %v46, 2147483648
    %v59 = vor.u32 1.1754944e-38, %v58
    %v60 = vsel %vm57, %v59, %v55
    %v61 = vmul.f32 1.0, %v60
    %v63 = vlaneseq
    %v64 = vand.u32 %v63, 127
    %v65 = vperm.slane %v61, %v64
    %vm67 = vcmask 57344
    %68 = vst.msk [vmem:[#allocation6] sm:$0x1] %vm67, %v65
    // Predicated region
    $region18: #{tpu_custom_call.1} parent=1 // pred_check
      _
    $region19: #{tpu_custom_call.1} parent=1 // pred_check_branch
      %70 = sbr.rel (0) target = $region21
    $region20: #{tpu_custom_call.1} parent=1 // pred_region
      %72 = vsyncadd [#allocation5], 0
      %s74 = sshll.u32 [#allocation6], 4
      %s75 = int_to_ptr.vmem [resolvable:$true] %s74
      %s76 = sshll.u32 %s3, 4
      %s77 = int_to_ptr.hbm [resolvable:$true] %s76
      %79 = dma.vmem_to_hbm [thread:$0]  %s75, 16, %s77, [#allocation5]
    $region21: #{tpu_custom_call.1} parent=1 // pred_fallthru
      _
    // Predicated region
    $region22: #{tpu_custom_call.1} parent=1 // pred_check
      _
    $region23: #{tpu_custom_call.1} parent=1 // pred_check_branch
      %81 = sbr.rel (0) target = $region25
    $region24: #{tpu_custom_call.1} parent=1 // pred_region
      %83 = dma.done [#allocation5], 16
    $region25: #{tpu_custom_call.1} parent=1 // pred_fallthru
      _
    %84 = vsyncpa [#allocation4], 1
    %85 = vsyncpa [#allocation5], 1

</llo_original>
